<compile_context>
chip_gen: v5e
topology: v5e:2x2
jax: 0.10.0
libtpu: 0.0.40
codegen_flags: <defaults>
</compile_context>

<pallas_src>
import functools

import jax
import jax.numpy as jnp
from jax import lax
from jax.experimental import pallas as pl
from jax.experimental.pallas import tpu as pltpu

KH = KW = 3
STRIDE = 2
PAD = 1


def _kernel_bn(p_ref, w_ref, o_ref, sum_sc, *, eps, neg_slope, n_valid, tn,
               n_tiles, masked):
    """use_bn=True path. One (batch, N-tile) per grid step.

    p_ref  : (K_pad, TN)     bf16 im2col patch tile (spatial on lanes)
    w_ref  : (OC, K_pad)     bf16 flattened conv weight
    o_ref  : (OC, N_pad)     f32 output block, resident across the N axis
    sum_sc : (OC, 1)         f32 per-channel running sum (cross-tile)
    """
    oc = o_ref.shape[0]
    nt = pl.program_id(1)

    @pl.when(nt == 0)
    def _init():
        sum_sc[...] = jnp.zeros_like(sum_sc)

    # Conv tile: one MXU matmul (OC, K) @ (K, TN) -> (OC, TN), f32 accumulate.
    y = jnp.dot(w_ref[...], p_ref[...], preferred_element_type=jnp.float32)
    # Padded lanes hold zero patches (and no bias under use_bn) so they do not
    # pollute the running sum.
    sum_sc[...] += jnp.sum(y, axis=-1, keepdims=True)
    start = pl.multiple_of(nt * tn, tn)
    o_ref[:, pl.ds(start, tn)] = y.astype(o_ref.dtype)

    @pl.when(nt == n_tiles - 1)
    def _finalize():
        inv_n = jnp.float32(1.0 / n_valid)
        mean = sum_sc[...] * inv_n                              # (OC, 1)

        def centered(i):  # static tile index
            tile = o_ref[:, pl.ds(i * tn, tn)].astype(jnp.float32) - mean
            if masked and i == n_tiles - 1:   # padded lanes only in last tile
                lane = i * tn + lax.broadcasted_iota(jnp.int32, tile.shape, 1)
                tile = jnp.where(lane < n_valid, tile, 0.0)
            return tile

        # Pass 1 (static unroll over N tiles): biased two-pass variance.
        var = jnp.zeros((oc, 1), jnp.float32)
        for i in range(n_tiles):
            c = centered(i)
            var = var + jnp.sum(c * c, axis=-1, keepdims=True)
        inv_std = lax.rsqrt(var * inv_n + jnp.float32(eps))     # EUP rsqrt

        # Pass 2: normalize + LeakyReLU, lane-dense tile stores.
        a = jnp.float32(neg_slope)
        for i in range(n_tiles):
            z = centered(i) * inv_std
            o_ref[:, pl.ds(i * tn, tn)] = jnp.maximum(z, a * z).astype(
                o_ref.dtype)


def _kernel_nobn(p_ref, w_ref, b_ref, o_ref, *, neg_slope):
    """use_bn=False path: conv + bias + LeakyReLU, streaming per N tile."""
    y = jnp.dot(w_ref[...], p_ref[...], preferred_element_type=jnp.float32)
    y = y + b_ref[...]
    a = jnp.float32(neg_slope)
    o_ref[...] = jnp.maximum(y, a * y).astype(o_ref.dtype)


def _im2col_nchw(xp, Ho, Wo):
    """xp: reflect-padded (B, IC, Hp, Wp) -> patches (B, IC*9, Ho*Wo).

    K ordering (ic, ky, kx) matches weight.reshape(OC, IC*9).  Taps are
    stacked on axis=2 directly (no HBM-level transpose of the patches slab).
    """
    B, IC, _, _ = xp.shape
    taps = []
    for ky in range(KH):
        for kx in range(KW):
            taps.append(xp[:, :, ky:ky + STRIDE * Ho:STRIDE,
                           kx:kx + STRIDE * Wo:STRIDE])   # (B, IC, Ho, Wo)
    t = jnp.stack(taps, axis=2)                           # (B, IC, 9, Ho, Wo)
    return t.reshape(B, IC * KH * KW, Ho * Wo)


def _round_up(n, m):
    return ((n + m - 1) // m) * m


def _pick_tn(n_pad, max_tn=2048):
    """Largest multiple-of-128 divisor of n_pad not exceeding max_tn."""
    best = 128
    for t in range(128, min(n_pad, max_tn) + 1, 128):
        if n_pad % t == 0:
            best = t
    return best


@functools.partial(jax.jit, static_argnames=("use_bn", "negative_slope", "eps"))
def contracting_block(x, weight, bias, *, use_bn=True, negative_slope=0.2,
                      eps=1e-5):
    """x: (B, IC, H, W) f32 NCHW; weight: (OC, IC, 3, 3); bias: (OC,)."""
    B, IC, H, W = x.shape
    OC = weight.shape[0]
    assert H >= 2 and W >= 2, "reflect padding of 1 requires H, W >= 2"

    Ho = (H + 2 * PAD - KH) // STRIDE + 1
    Wo = (W + 2 * PAD - KW) // STRIDE + 1
    N = Ho * Wo
    K = IC * KH * KW
    K_pad = _round_up(K, 16)      # dense sublanes for bf16 patches / MXU feed
    N_pad = _round_up(N, 128)     # dense lanes (no masked stores)
    TN = _pick_tn(N_pad)
    n_tiles = N_pad // TN

    # Wrapper-side layout plumbing (bf16, no transpose): reflect pad + im2col
    # + zero-pad K/N, pre-flattened 2-D weights.
    xp = jnp.pad(x.astype(jnp.bfloat16),
                 ((0, 0), (0, 0), (PAD, PAD), (PAD, PAD)), mode="reflect")
    patches = _im2col_nchw(xp, Ho, Wo)                        # (B, K, N) bf16
    if K_pad != K or N_pad != N:
        patches = jnp.pad(patches, ((0, 0), (0, K_pad - K), (0, N_pad - N)))
    w2 = weight.reshape(OC, K).astype(jnp.bfloat16)           # (OC, K)
    if K_pad != K:
        w2 = jnp.pad(w2, ((0, 0), (0, K_pad - K)))

    grid = (B, n_tiles)
    params = pltpu.CompilerParams(dimension_semantics=("parallel", "arbitrary"))

    if use_bn:
        kernel = functools.partial(
            _kernel_bn, eps=float(eps), neg_slope=float(negative_slope),
            n_valid=N, tn=TN, n_tiles=n_tiles, masked=(N_pad != N))
        out = pl.pallas_call(
            kernel,
            out_shape=jax.ShapeDtypeStruct((B, OC, N_pad), jnp.float32),
            grid_spec=pltpu.PrefetchScalarGridSpec(
                num_scalar_prefetch=0,
                grid=grid,
                in_specs=[
                    pl.BlockSpec((None, K_pad, TN), lambda b, n: (b, 0, n)),
                    pl.BlockSpec((OC, K_pad), lambda b, n: (0, 0)),
                ],
                out_specs=pl.BlockSpec((None, OC, N_pad),
                                       lambda b, n: (b, 0, 0)),
                scratch_shapes=[pltpu.VMEM((OC, 1), jnp.float32)],
            ),
            compiler_params=params,
        )(patches, w2)
    else:
        b2 = bias.reshape(OC, 1).astype(jnp.float32)
        kernel = functools.partial(_kernel_nobn,
                                   neg_slope=float(negative_slope))
        out = pl.pallas_call(
            kernel,
            out_shape=jax.ShapeDtypeStruct((B, OC, N_pad), jnp.float32),
            grid_spec=pltpu.PrefetchScalarGridSpec(
                num_scalar_prefetch=0,
                grid=grid,
                in_specs=[
                    pl.BlockSpec((None, K_pad, TN), lambda b, n: (b, 0, n)),
                    pl.BlockSpec((OC, K_pad), lambda b, n: (0, 0)),
                    pl.BlockSpec((OC, 1), lambda b, n: (0, 0)),
                ],
                out_specs=pl.BlockSpec((None, OC, TN), lambda b, n: (b, 0, n)),
            ),
            compiler_params=params,
        )(patches, w2, b2)

    if N_pad != N:
        out = out[:, :, :N]
    # (B, OC, Ho*Wo) -> NCHW with a free reshape (no transpose).
    return out.reshape(B, OC, Ho, Wo)


if __name__ == "__main__":
    # Small shapes consistent with the module: B=2, IC=4 -> OC=8, H=W=16.
    B, IC, H, W = 2, 4, 16, 16
    OC = IC * 2

    key = jax.random.PRNGKey(0)
    kx_, kw_, kb_ = jax.random.split(key, 3)
    x = jax.random.normal(kx_, (B, IC, H, W), dtype=jnp.float32)
    weight = 0.1 * jax.random.normal(kw_, (OC, IC, KH, KW), dtype=jnp.float32)
    bias = 0.1 * jax.random.normal(kb_, (OC,), dtype=jnp.float32)

    out = jax.block_until_ready(contracting_block(x, weight, bias))
    assert out.shape == (B, OC, H // 2, W // 2), out.shape

    # Reference: XLA conv on the same bf16-quantized inputs the kernel sees
    # (isolates kernel error from intended bf16 quantization), f32 elsewhere.
    x_q = x.astype(jnp.bfloat16).astype(jnp.float32)
    w_q = weight.astype(jnp.bfloat16).astype(jnp.float32)
    x_pad = jnp.pad(x_q, ((0, 0), (0, 0), (PAD, PAD), (PAD, PAD)),
                    mode="reflect")
    conv = lax.conv_general_dilated(
        x_pad, w_q, window_strides=(STRIDE, STRIDE), padding="VALID",
        dimension_numbers=("NCHW", "OIHW", "NCHW"),
    ) + bias[None, :, None, None]

    # use_bn=True reference: InstanceNorm2d (biased var) + LeakyReLU(0.2)
    mean = conv.mean(axis=(2, 3), keepdims=True)
    var = ((conv - mean) ** 2).mean(axis=(2, 3), keepdims=True)
    normed = (conv - mean) / jnp.sqrt(var + 1e-5)
    ref_bn = jnp.where(normed > 0, normed, 0.2 * normed)
    err_bn = float(jnp.max(jnp.abs(out - ref_bn)))
    assert jnp.allclose(out, ref_bn, atol=2e-3, rtol=2e-3), err_bn

    # use_bn=False path: conv + bias + LeakyReLU(0.2)
    out_nb = jax.block_until_ready(
        contracting_block(x, weight, bias, use_bn=False))
    ref_nb = jnp.where(conv > 0, conv, 0.2 * conv)
    err_nb = float(jnp.max(jnp.abs(out_nb - ref_nb)))
    assert jnp.allclose(out_nb, ref_nb, atol=2e-3, rtol=2e-3), err_nb

    print("KERNEL_OK")
</pallas_src>

<mosaic_0001>
module attributes {stable_mosaic.version = 11 : i64} {
  func.func @_kernel_bn(%arg0: i32, %arg1: i32, %arg2: memref<1x48x128xbf16, #tpu.memory_space<vmem>>, %arg3: memref<8x48xbf16, #tpu.memory_space<vmem>>, %arg4: memref<1x8x128xf32, #tpu.memory_space<vmem>>, %arg5: memref<8x1xf32, #tpu.memory_space<vmem>>) attributes {dimension_semantics = [#tpu.dimension_semantics<parallel>, #tpu.dimension_semantics<arbitrary>], iteration_bounds = array<i64: 2, 1>, scalar_prefetch = 0 : i64, scratch_operands = 1 : i64, tpu.core_type = #tpu.core_type<tc>, window_params = [{transform_indices = @transform_0, window_bounds = array<i64: 1, 48, 128>}, {pipeline_mode = #tpu.pipeline_mode<synchronous>, transform_indices = @transform_1, window_bounds = array<i64: 8, 48>}, {transform_indices = @transform_2, window_bounds = array<i64: 1, 8, 128>}]} {
    %c0_i32 = arith.constant 0 : i32
    %0 = arith.cmpi eq, %arg1, %c0_i32 : i32
    %1 = arith.extui %0 : i1 to i32
    %c0_i32_0 = arith.constant 0 : i32
    %2 = arith.cmpi ne, %1, %c0_i32_0 : i32
    scf.if %2 {
      %cst_14 = arith.constant 0.000000e+00 : f32
      %21 = vector.broadcast %cst_14 : f32 to vector<8x1xf32>
      %c0_15 = arith.constant 0 : index
      %c0_16 = arith.constant 0 : index
      %22 = vector.load %arg5[%c0_15, %c0_16] : memref<8x1xf32, #tpu.memory_space<vmem>>, vector<8x1xf32>
      tpu.vector_store %arg5[%c0_15, %c0_16], %21 {strides = array<i32>} : memref<8x1xf32, #tpu.memory_space<vmem>>, vector<8x1xf32>,
    } else {
    }
    %c0 = arith.constant 0 : index
    %c0_1 = arith.constant 0 : index
    %3 = vector.load %arg3[%c0, %c0_1] : memref<8x48xbf16, #tpu.memory_space<vmem>>, vector<8x48xbf16>
    %c0_2 = arith.constant 0 : index
    %c0_3 = arith.constant 0 : index
    %c0_4 = arith.constant 0 : index
    %4 = vector.load %arg2[%c0_2, %c0_3, %c0_4] : memref<1x48x128xbf16, #tpu.memory_space<vmem>>, vector<1x48x128xbf16>
    %5 = vector.shape_cast %4 : vector<1x48x128xbf16> to vector<48x128xbf16>
    %cst = arith.constant dense<0.000000e+00> : vector<8x128xf32>
    %6 = tpu.matmul %3, %5, %cst {dimension_numbers = #tpu.dot_dimension_numbers<[1], [0], [0], [1], [0, 0, 1, 1], [], []>} : vector<8x48xbf16>, vector<48x128xbf16>, vector<8x128xf32> -> vector<8x128xf32>
    %c0_5 = arith.constant 0 : index
    %c0_6 = arith.constant 0 : index
    %7 = vector.load %arg5[%c0_5, %c0_6] : memref<8x1xf32, #tpu.memory_space<vmem>>, vector<8x1xf32>
    %cst_7 = arith.constant dense<0.000000e+00> : vector<8xf32>
    %8 = vector.multi_reduction <add>, %6, %cst_7 [1] : vector<8x128xf32> to vector<8xf32>
    %9 = vector.shape_cast %8 : vector<8xf32> to vector<8x1xf32>
    %10 = arith.addf %7, %9 : vector<8x1xf32>
    %c0_8 = arith.constant 0 : index
    %c0_9 = arith.constant 0 : index
    %11 = vector.load %arg5[%c0_8, %c0_9] : memref<8x1xf32, #tpu.memory_space<vmem>>, vector<8x1xf32>
    tpu.vector_store %arg5[%c0_8, %c0_9], %10 {strides = array<i32>} : memref<8x1xf32, #tpu.memory_space<vmem>>, vector<8x1xf32>,
    %c128_i32 = arith.constant 128 : i32
    %12 = arith.muli %arg1, %c128_i32 : i32
    %13 = tpu.assume_multiple %12, 128 : i32
    %c0_10 = arith.constant 0 : index
    %c0_11 = arith.constant 0 : index
    %14 = arith.index_cast %13 : i32 to index
    %15 = vector.load %arg4[%c0_10, %c0_11, %14] : memref<1x8x128xf32, #tpu.memory_space<vmem>>, vector<1x8x128xf32>
    %16 = vector.shape_cast %15 : vector<1x8x128xf32> to vector<8x128xf32>
    %17 = vector.shape_cast %6 : vector<8x128xf32> to vector<1x8x128xf32>
    tpu.vector_store %arg4[%c0_10, %c0_11, %14], %17 {strides = array<i32>} : memref<1x8x128xf32, #tpu.memory_space<vmem>>, vector<1x8x128xf32>,
    %c0_i32_12 = arith.constant 0 : i32
    %18 = arith.cmpi eq, %arg1, %c0_i32_12 : i32
    %19 = arith.extui %18 : i1 to i32
    %c0_i32_13 = arith.constant 0 : i32
    %20 = arith.cmpi ne, %19, %c0_i32_13 : i32
    scf.if %20 {
      %c0_14 = arith.constant 0 : index
      %c0_15 = arith.constant 0 : index
      %21 = vector.load %arg5[%c0_14, %c0_15] : memref<8x1xf32, #tpu.memory_space<vmem>>, vector<8x1xf32>
      %cst_16 = arith.constant 1.562500e-02 : f32
      %22 = vector.broadcast %cst_16 : f32 to vector<8x1xf32>
      %23 = arith.mulf %21, %22 : vector<8x1xf32>
      %cst_17 = arith.constant 0.000000e+00 : f32
      %24 = vector.broadcast %cst_17 : f32 to vector<8x1xf32>
      %c0_18 = arith.constant 0 : index
      %c0_19 = arith.constant 0 : index
      %c0_20 = arith.constant 0 : index
      %25 = vector.load %arg4[%c0_18, %c0_19, %c0_20] : memref<1x8x128xf32, #tpu.memory_space<vmem>>, vector<1x8x128xf32>
      %26 = vector.shape_cast %25 : vector<1x8x128xf32> to vector<8x128xf32>
      %27 = vector.broadcast %23 : vector<8x1xf32> to vector<8x128xf32>
      %28 = arith.subf %26, %27 : vector<8x128xf32>
      %29 = tpu.iota {dimensions = array<i32: 1>} : vector<8x128xi32>
      %c0_i32_21 = arith.constant 0 : i32
      %30 = vector.broadcast %c0_i32_21 : i32 to vector<8x128xi32>
      %31 = arith.addi %30, %29 : vector<8x128xi32>
      %c64_i32 = arith.constant 64 : i32
      %32 = vector.broadcast %c64_i32 : i32 to vector<8x128xi32>
      %33 = arith.cmpi slt, %31, %32 : vector<8x128xi32>
      %cst_22 = arith.constant 0.000000e+00 : f32
      %34 = vector.broadcast %cst_22 : f32 to vector<8x128xf32>
      %35 = arith.select %33, %28, %34 : vector<8x128xi1>, vector<8x128xf32>
      %36 = arith.mulf %35, %35 : vector<8x128xf32>
      %cst_23 = arith.constant dense<0.000000e+00> : vector<8xf32>
      %37 = vector.multi_reduction <add>, %36, %cst_23 [1] : vector<8x128xf32> to vector<8xf32>
      %38 = vector.shape_cast %37 : vector<8xf32> to vector<8x1xf32>
      %39 = arith.addf %24, %38 : vector<8x1xf32>
      %cst_24 = arith.constant 1.562500e-02 : f32
      %40 = vector.broadcast %cst_24 : f32 to vector<8x1xf32>
      %41 = arith.mulf %39, %40 : vector<8x1xf32>
      %cst_25 = arith.constant 9.99999974E-6 : f32
      %42 = vector.broadcast %cst_25 : f32 to vector<8x1xf32>
      %43 = arith.addf %41, %42 : vector<8x1xf32>
      %44 = math.rsqrt %43 : vector<8x1xf32>
      %c0_26 = arith.constant 0 : index
      %c0_27 = arith.constant 0 : index
      %c0_28 = arith.constant 0 : index
      %45 = vector.load %arg4[%c0_26, %c0_27, %c0_28] : memref<1x8x128xf32, #tpu.memory_space<vmem>>, vector<1x8x128xf32>
      %46 = vector.shape_cast %45 : vector<1x8x128xf32> to vector<8x128xf32>
      %47 = vector.broadcast %23 : vector<8x1xf32> to vector<8x128xf32>
      %48 = arith.subf %46, %47 : vector<8x128xf32>
      %49 = tpu.iota {dimensions = array<i32: 1>} : vector<8x128xi32>
      %c0_i32_29 = arith.constant 0 : i32
      %50 = vector.broadcast %c0_i32_29 : i32 to vector<8x128xi32>
      %51 = arith.addi %50, %49 : vector<8x128xi32>
      %c64_i32_30 = arith.constant 64 : i32
      %52 = vector.broadcast %c64_i32_30 : i32 to vector<8x128xi32>
      %53 = arith.cmpi slt, %51, %52 : vector<8x128xi32>
      %cst_31 = arith.constant 0.000000e+00 : f32
      %54 = vector.broadcast %cst_31 : f32 to vector<8x128xf32>
      %55 = arith.select %53, %48, %54 : vector<8x128xi1>, vector<8x128xf32>
      %56 = vector.broadcast %44 : vector<8x1xf32> to vector<8x128xf32>
      %57 = arith.mulf %55, %56 : vector<8x128xf32>
      %cst_32 = arith.constant 2.000000e-01 : f32
      %58 = vector.broadcast %cst_32 : f32 to vector<8x128xf32>
      %59 = arith.mulf %58, %57 : vector<8x128xf32>
      %60 = arith.maximumf %57, %59 : vector<8x128xf32>
      %c0_33 = arith.constant 0 : index
      %c0_34 = arith.constant 0 : index
      %c0_35 = arith.constant 0 : index
      %61 = vector.load %arg4[%c0_33, %c0_34, %c0_35] : memref<1x8x128xf32, #tpu.memory_space<vmem>>, vector<1x8x128xf32>
      %62 = vector.shape_cast %61 : vector<1x8x128xf32> to vector<8x128xf32>
      %63 = vector.shape_cast %60 : vector<8x128xf32> to vector<1x8x128xf32>
      tpu.vector_store %arg4[%c0_33, %c0_34, %c0_35], %63 {strides = array<i32>} : memref<1x8x128xf32, #tpu.memory_space<vmem>>, vector<1x8x128xf32>,
    } else {
    }
    return
  }
  func.func @transform_0(%arg0: i32, %arg1: i32) -> (i32, i32, i32) {
    %c0_i32 = arith.constant 0 : i32
    %c0_i32_0 = arith.constant 0 : i32
    return %arg0, %c0_i32, %arg1 : i32, i32, i32
  }
  func.func @transform_1(%arg0: i32, %arg1: i32) -> (i32, i32) {
    %c0_i32 = arith.constant 0 : i32
    %c0_i32_0 = arith.constant 0 : i32
    %c0_i32_1 = arith.constant 0 : i32
    return %c0_i32, %c0_i32_0 : i32, i32
  }
  func.func @transform_2(%arg0: i32, %arg1: i32) -> (i32, i32, i32) {
    %c0_i32 = arith.constant 0 : i32
    %c0_i32_0 = arith.constant 0 : i32
    %c0_i32_1 = arith.constant 0 : i32
    return %arg0, %c0_i32, %c0_i32_0 : i32, i32, i32
  }
}

</mosaic_0001>

<llo_original>
// kernel: contracting_block.1
$region0: #{contracting_block.1}
  #allocation0 [shape = 'u32[]', space=smem, size = 0x4, offset = 0x4, fixed_abs, tag = 'smem constant byte address 0x4 - core index']
  #allocation1 [shape = 'u32[72,128]{1,0:T(1,128)}', space=vmem, size = 0x9000, scoped, tag = 'internal scratch']
  #allocation2 [shape = 'f32[8,1]{1,0:T(8,128)}', space=vmem, size = 0x1000, scoped, tag = 'scratch operand']
  %s0 = inlined_call_operand.vmem [shape: bf16[2,48,128], index: 0, kind: input, shape index: {}]
  %s1 = inlined_call_operand.vmem [shape: bf16[8,48], index: 1, kind: input, shape index: {}]
  %s2 = inlined_call_operand.vmem [shape: f32[2,8,128], index: 2, kind: output, shape index: {}]
  %s3 = sld [smem:[#allocation0]]
  $region49: #{contracting_block.1} parent=0
    _
  %s5 = ssub.s32 1, %s3
  %s6 = scalar_select 0, %s5, %s3
  loop: start=0, step=1, limit=4
  $region2: #{contracting_block.1} parent=0 // loop_pre_header
    _
  $region3: #{contracting_block.1} parent=0 // loop_header
    %s8 = sphi 0, %s12
    %p9 = scmp.ge.s32.totalorder %s8, 4
    %s15 = sphi 0, %s27
    %s16 = sphi 0, %s23
    %s17 = sphi 0, %s15
    %s18 = sphi 0, %s16
    %s19 = sphi 0, %s17
    %s20 = sphi 0, %s18
    %s32 = sphi 0, %s34
    %s35 = sphi 0, %s32
    %s36 = sphi 0, %s35
    %s52 = sphi 0, %s36
    %s56 = sphi 0, %s56
    %s58 = sphi 0, %s56
    %s59 = sphi 0, %s58
    %s73 = sphi 0, %s59
    %s79 = sphi 0, %s81
    %s82 = sphi 0, %s79
    %s83 = sphi 0, %s82
    %s99 = sphi 0, %s83
  $region4: #{contracting_block.1} parent=0 // loop_header_branch
    %11 = sbr.rel (%p9) target = $region8
  $region5: #{contracting_block.1} parent=0 // loop_body
    %s13 = ssub.s32 %s8, 1
    %s14 = ssub.s32 %s8, 2
    %s21 = sadd.s32 1, %s16
    %p22 = scmp.ge.s32.totalorder %s21, 1
    %s23 = scalar_select %p22, 0, %s21
    %s24 = sadd.s32 1, %s15
    %s25 = scalar_select %p22, %s24, %s15
    %p26 = scmp.ge.s32.totalorder %s25, 2
    %s27 = scalar_select %p26, 0, %s25
    %s28 = ssub.s32 %s15, %s27
    %s29 = ssub.s32 %s16, %s23
    %s30 = sor.u32 %s28, %s29
    %p31 = scmp.eq.s32.totalorder %s30, 0
    %s33 = sadd.s32 %s32, 1
    %s34 = scalar_select %p31, %s32, %s33
    %p37 = pneg %p31
    %p38 = scmp.eq.s32.totalorder %s8, 1
    %p39 = por %p37, %p38
    %p40 = scmp.ne.s32.totalorder %s32, %s35
    %p41 = scmp.eq.s32.totalorder %s8, 0
    %p42 = por %p40, %p41
    %p43 = scmp.ne.s32.totalorder %s32, %s35
    %p44 = scmp.eq.s32.totalorder %s13, 1
    %p45 = por %p43, %p44
    %p46 = scmp.ne.s32.totalorder %s35, %s36
    %p47 = scmp.eq.s32.totalorder %s13, 0
    %p48 = por %p46, %p47
    %p49 = scmp.ne.s32.totalorder %s35, %s36
    %p50 = scmp.eq.s32.totalorder %s14, 1
    %p51 = por %p49, %p50
    %p53 = scmp.ne.s32.totalorder %s36, %s52
    %p54 = scmp.eq.s32.totalorder %s14, 0
    %p55 = por %p53, %p54
    %s57 = sadd.s32 %s56, 1
    %p60 = scmp.eq.s32.totalorder %s8, 1
    %p61 = scmp.ne.s32.totalorder %s56, %s58
    %p62 = scmp.eq.s32.totalorder %s8, 0
    %p63 = por %p61, %p62
    %p64 = scmp.ne.s32.totalorder %s56, %s58
    %p65 = scmp.eq.s32.totalorder %s13, 1
    %p66 = por %p64, %p65
    %p67 = scmp.ne.s32.totalorder %s58, %s59
    %p68 = scmp.eq.s32.totalorder %s13, 0
    %p69 = por %p67, %p68
    %p70 = scmp.ne.s32.totalorder %s58, %s59
    %p71 = scmp.eq.s32.totalorder %s14, 1
    %p72 = por %p70, %p71
    %p74 = scmp.ne.s32.totalorder %s59, %s73
    %p75 = scmp.eq.s32.totalorder %s14, 0
    %p76 = por %p74, %p75
    %s77 = ssub.s32 %s15, %s27
    %p78 = scmp.eq.s32.totalorder %s77, 0
    %s80 = sadd.s32 %s79, 1
    %s81 = scalar_select %p78, %s79, %s80
    %p84 = pneg %p78
    %p85 = scmp.eq.s32.totalorder %s8, 1
    %p86 = por %p84, %p85
    %p87 = scmp.ne.s32.totalorder %s79, %s82
    %p88 = scmp.eq.s32.totalorder %s8, 0
    %p89 = por %p87, %p88
    %p90 = scmp.ne.s32.totalorder %s79, %s82
    %p91 = scmp.eq.s32.totalorder %s13, 1
    %p92 = por %p90, %p91
    %p93 = scmp.ne.s32.totalorder %s82, %s83
    %p94 = scmp.eq.s32.totalorder %s13, 0
    %p95 = por %p93, %p94
    %p96 = scmp.ne.s32.totalorder %s82, %s83
    %p97 = scmp.eq.s32.totalorder %s14, 1
    %p98 = por %p96, %p97
    %p100 = scmp.ne.s32.totalorder %s83, %s99
    %p101 = scmp.eq.s32.totalorder %s14, 0
    %p102 = por %p100, %p101
    %p103 = scmp.le.s32.totalorder 1, %s8
    %p104 = scmp.lt.s32.totalorder %s8, 3
    %p105 = pnand %p103, %p104
    %p106 = pneg %p105
    // Predicated region
    $region9: #{contracting_block.1} parent=5 // pred_check
      _
    $region10: #{contracting_block.1} parent=5 // pred_check_branch
      %108 = sbr.rel (%p105) target = $region12
    $region11: #{contracting_block.1} parent=5 // pred_region
      %s109 = ssub.s32 %s8, 1
      // Predicated region
      $region13: #{contracting_block.1} parent=11 // pred_check
        %p110 = pneg %p69
      $region14: #{contracting_block.1} parent=11 // pred_check_branch
        %112 = sbr.rel (%p110) target = $region16
      $region15: #{contracting_block.1} parent=11 // pred_region
        _
      $region16: #{contracting_block.1} parent=11 // pred_fallthru
        _
    $region12: #{contracting_block.1} parent=5 // pred_fallthru
      _
    %p113 = scmp.lt.s32.totalorder %s8, 2
    // Predicated region
    $region17: #{contracting_block.1} parent=5 // pred_check
      %p114 = pneg %p113
    $region18: #{contracting_block.1} parent=5 // pred_check_branch
      %116 = sbr.rel (%p114) target = $region20
    $region19: #{contracting_block.1} parent=5 // pred_region
      // Predicated region
      $region21: #{contracting_block.1} parent=19 // pred_check
        %p117 = pneg %p42
      $region22: #{contracting_block.1} parent=19 // pred_check_branch
        %119 = sbr.rel (%p117) target = $region24
      $region23: #{contracting_block.1} parent=19 // pred_region
        %p120 = scmp.lt.s32.totalorder %s15, 1
        %s121 = scalar_select %p120, %s15, 1
        %p122 = scmp.lt.s32.totalorder %s16, 0
        %s123 = scalar_select %p122, %s16, 0
        %s124 = smul.addr %s121, 6
        %s125 = sadd.s32 %s123, %s124
        %s126 = smul.addr %s125, 4
        %s127 = scalar_lea.vmem %s0, %s126
      $region24: #{contracting_block.1} parent=19 // pred_fallthru
        _
    $region20: #{contracting_block.1} parent=5 // pred_fallthru
      _
    %p128 = scmp.le.s32.totalorder 1, %s8
    %p129 = scmp.lt.s32.totalorder %s8, 3
    %p130 = pnand %p128, %p129
    %p131 = pneg %p130
    // Predicated region
    $region25: #{contracting_block.1} parent=5 // pred_check
      _
    $region26: #{contracting_block.1} parent=5 // pred_check_branch
      %133 = sbr.rel (%p130) target = $region28
    $region27: #{contracting_block.1} parent=5 // pred_region
      %s134 = ssub.s32 %s8, 1
      %p135 = scmp.lt.s32.totalorder %s17, 1
      %s136 = scalar_select %p135, %s17, 1
      %p137 = scmp.lt.s32.totalorder %s18, 0
      %s138 = scalar_select %p137, %s18, 0
      %s139 = smul.addr %s136, 6
      %s140 = sadd.s32 %s138, %s139
      %s141 = smul.addr %s140, 4
      %s142 = scalar_lea.vmem %s0, %s141
      %p143 = pneg %p48
      %p144 = pneg %p45
      %p145 = pneg %p69
      %p146 = pneg %p66
      %p147 = pneg %p95
      %p148 = pneg %p92
      %p149 = scmp.lt.s32.totalorder %s17, 1
      %s150 = scalar_select %p149, %s17, 1
      %s151 = smul.addr %s150, 8
      %s152 = scalar_lea.vmem %s2, %s151
      %p153 = scmp.lt.s32.totalorder %s17, 1
      %s154 = scalar_select %p153, %s17, 1
      %p155 = scmp.lt.s32.totalorder %s18, 0
      %s156 = scalar_select %p155, %s18, 0
      %s157 = smul.addr %s154, 6
      %s158 = sadd.s32 %s156, %s157
      %s159 = smul.addr %s158, 4
      %s160 = scalar_lea.vmem %s0, %s159
      %p161 = scmp.lt.s32.totalorder %s17, 1
      %s162 = scalar_select %p161, %s17, 1
      %s163 = smul.addr %s162, 8
      %s164 = scalar_lea.vmem %s2, %s163
      %p166 = scmp.eq.s32.totalorder %s18, 0
      // Predicated region
      $region29: #{contracting_block.1} parent=27 // pred_check
        %p167 = pneg %p166
      $region30: #{contracting_block.1} parent=27 // pred_check_branch
        %169 = sbr.rel (%p167) target = $region32
      $region31: #{contracting_block.1} parent=27 // pred_region
        %vm170 = vcmask 7168
        %171 = vst.msk [vmem:[#allocation2] sm:$0xff] %vm170, 0.0
      $region32: #{contracting_block.1} parent=27 // pred_fallthru
        _
      %v172 = vld [vmem:[%s1] sm:$0xf]
      %v173 = vld [vmem:[%s160] sm:$0xf]
      %v174 = vld [vmem:[%s160 + $0x4] sm:$0xf]
      %v175 = vld [vmem:[%s160 + $0x8] sm:$0xf]
      %v176 = vld [vmem:[%s160 + $0xc] sm:$0xf]
      %v177 = vld [vmem:[%s160 + $0x10] sm:$0xf]
      %v178 = vld [vmem:[%s160 + $0x14] sm:$0xf]
      %v185 = vunpack.c.l.b16 %v173
      %v186 = vunpack.c.l.b16 %v174
      %v187 = vunpack.c.l.b16 %v175
      %v188 = vunpack.c.l.b16 %v176
      %v189 = vunpack.c.l.b16 %v177
      %v190 = vunpack.c.l.b16 %v178
      %v191 = vpack.c.b16 %v186, %v185
      %v192 = vpack.c.b16 %v188, %v187
      %v193 = vpack.c.b16 %v190, %v189
      %vm197 = vcmask 392192
      %v199 = vsel %vm197, %v172, 0
      %201 = vmatpush.bf16.msra.mxu0 0
      %202 = vmatpush.bf16.msra.mxu0 0
      %203 = vmatpush.bf16.msra.mxu0 0
      %204 = vmatpush.bf16.msra.mxu0 0
      %205 = vmatpush.bf16.msra.mxu0 0
      %206 = vmatpush.bf16.msra.mxu0 %v193
      %207 = vmatpush.bf16.msra.mxu0 %v192
      %208 = vmatpush.bf16.msra.mxu0 %v191
      %209 = vmatmul.bf16.gmra.mxu0 %v199
      %v210 = vpop.f32.mrf.mxu0
      %v211 = vadd.f32 0.0, %v210
      %v212 = vpop.f32.mrf.mxu0
      %213 = vdwg.mxu0
      %v214 = vld [vmem:[#allocation2] sm:$0xff]
      %215 = vadd.xlane.f32.xlu0 %v211
      %v216 = vpop.xlane.xlu0 %215
      %v217 = vadd.f32 %v214, %v216
      %vm218 = vcmask 7168
      %219 = vst.msk [vmem:[#allocation2] sm:$0xff] %vm218, %v217
      %s220 = smul.u32 %s18, 128
      %s221 = sshra.s32 %s220, 7
      %s222 = sand.u32 %s220, 127
      %s223 = scalar_lea.vmem %s164, %s221
      %224 = vst [vmem:[%s223] sm:$0xff] %v211
      // Predicated region
      $region33: #{contracting_block.1} parent=27 // pred_check
        %p225 = pneg %p166
      $region34: #{contracting_block.1} parent=27 // pred_check_branch
        %227 = sbr.rel (%p225) target = $region36
      $region35: #{contracting_block.1} parent=27 // pred_region
        %v228 = vld [vmem:[#allocation2] sm:$0xff]
        %v229 = vmul.f32 %v228, 0.015625
        %v230 = vld [vmem:[%s164] sm:$0xff]
        %232 = vset.pattern.permute.xlu0 0
        %233 = vperm.xlu0 %232, %v229
        %v234 = vpop.permute.xlu0 %233
        %v236 = vsub.f32 %v230, %v234
        %v237 = vlaneseq
        %v238 = vand.u32 %v237, 127
        %vm239 = vcmp.lt.s32.totalorder %v238, 64
        %v240 = vsel %vm239, %v236, 0.0
        %v241 = vmul.f32 %v240, %v240
        %242 = vadd.xlane.f32.xlu0 %v241
        %v243 = vpop.xlane.xlu0 %242
        %v244 = vadd.f32 %v243, 0.0
        %v245 = vmul.f32 %v244, 0.015625
        %v246 = vadd.f32 %v245, 1e-05
        %v247 = vrsqrt.pop %v246
        %v248 = vmul.f32 %v247, %v246
        %v249 = vmul.f32 %v248, %v247
        %v250 = vmul.f32 0.5, %v249
        %v251 = vsub.f32 1.5, %v250
        %v252 = vmul.f32 %v247, %v251
        %vm253 = vweird.f32 %v246
        %vm254 = vweird.f32 %v247
        %vm255 = vmor %vm253, %vm254
        %v256 = vsel %vm255, %v247, %v252
        %v257 = vmul.f32 %v240, %v256
        %v258 = vmul.f32 %v257, 0.2
        %v259 = vmax.f32 %v257, %v258
        %260 = vst [vmem:[%s164] sm:$0xff] %v259
      $region36: #{contracting_block.1} parent=27 // pred_fallthru
        _
      %p261 = scmp.lt.s32.totalorder %s17, 1
      %s262 = scalar_select %p261, %s17, 1
      %s263 = smul.addr %s262, 8
      %s264 = scalar_lea.vmem %s2, %s263
      // Predicated region
      $region37: #{contracting_block.1} parent=27 // pred_check
        %p265 = pneg %p92
      $region38: #{contracting_block.1} parent=27 // pred_check_branch
        %267 = sbr.rel (%p265) target = $region40
      $region39: #{contracting_block.1} parent=27 // pred_region
        _
      $region40: #{contracting_block.1} parent=27 // pred_fallthru
        _
    $region28: #{contracting_block.1} parent=5 // pred_fallthru
      _
    %p268 = scmp.le.s32.totalorder 2, %s8
    // Predicated region
    $region41: #{contracting_block.1} parent=5 // pred_check
      %p269 = pneg %p268
    $region42: #{contracting_block.1} parent=5 // pred_check_branch
      %271 = sbr.rel (%p269) target = $region44
    $region43: #{contracting_block.1} parent=5 // pred_region
      %s272 = ssub.s32 %s8, 2
      // Predicated region
      $region45: #{contracting_block.1} parent=43 // pred_check
        %p273 = pneg %p98
      $region46: #{contracting_block.1} parent=43 // pred_check_branch
        %275 = sbr.rel (%p273) target = $region48
      $region47: #{contracting_block.1} parent=43 // pred_region
        %p276 = scmp.lt.s32.totalorder %s19, 1
        %s277 = scalar_select %p276, %s19, 1
        %s278 = smul.addr %s277, 8
        %s279 = scalar_lea.vmem %s2, %s278
      $region48: #{contracting_block.1} parent=43 // pred_fallthru
        _
    $region44: #{contracting_block.1} parent=5 // pred_fallthru
      _
  $region6: #{contracting_block.1} parent=0 // loop_footer
    %s12 = sadd.s32 1, %s8
  $region7: #{contracting_block.1} parent=0 // loop_footer_branch
    %7 = sbr.rel target = $region3
  $region8: #{contracting_block.1} parent=0 // loop_exit
    _

</llo_original>
